<compile_context>
chip_gen: v7x
topology: tpu7x:2x2x1
jax: 0.10.0
libtpu: 0.0.40
codegen_flags: <defaults>
</compile_context>

<pallas_src>
import functools

import jax
import jax.numpy as jnp
from jax import lax
from jax.experimental import pallas as pl
from jax.experimental.pallas import tpu as pltpu


def _round_up(x, m):
    return (x + m - 1) // m * m


def _textcnn_kernel(block_b, tS, S, E_pad, F3_pad, Kmax, vocab_rows,
                    tok_ref, emb_hbm, wconv_ref, bconv_ref, wfc_ref, bfc_ref,
                    o_ref, x_halo, pooled_ref, sem):
    """One (batch block, sequence tile) step of the fused TextCNN forward.

    tok_ref   : (B, S) int32 token ids in SMEM (scalar prefetch)
    emb_hbm   : (V+1, E_pad) embedding table in HBM (pl.ANY) -- DMA row gather
    wconv_ref : (Kmax*E_pad, F3_pad) packed conv weights (compute dtype)
    bconv_ref : (1, F3_pad) f32;  wfc_ref: (F3_pad, C_pad);  bfc_ref: (1, C_pad)
    o_ref     : (1, block_b, C_pad) f32 logits block (written on last seq tile)
    x_halo    : VMEM (block_b, tS+Kmax-1, E_pad) gathered embeddings + halo
    pooled_ref: VMEM (block_b, F3_pad) f32 running max across sequence tiles
    sem       : DMA semaphore shared by this step's row-gather copies
    """
    bi = pl.program_id(0)
    si = pl.program_id(1)
    n_seq = pl.num_programs(1)
    H = tS + Kmax - 1                       # sequence rows incl. halo
    L = (Kmax - 1) // 2                     # common left offset ('same' pad)
    cdt = x_halo.dtype                      # MXU operand dtype (bf16 or f32)

    # ---- running-max accumulator init (first sequence tile of this block) ----
    # 0 is a valid init: ReLU outputs are >= 0 and the zero-padded F3 columns
    # must stay finite (they multiply zero rows of wfc anyway).
    @pl.when(si == 0)
    def _():
        pooled_ref[...] = jnp.zeros_like(pooled_ref)

    # ---- embedding row gather HBM -> VMEM, with a (Kmax-1)-row halo ----------
    # Out-of-range sequence positions gather a clamped (valid) row and are
    # zero-masked afterwards, which reproduces the 'same' zero padding exactly.
    def _row_copy(b_local, j):
        s_glob = si * tS + j - L
        s_load = jnp.clip(s_glob, 0, S - 1)
        # Clamp token ids (nn.Embedding would error on OOB ids; never read OOB).
        tok = jnp.clip(tok_ref[bi * block_b + b_local, s_load], 0, vocab_rows - 1)
        return pltpu.make_async_copy(
            emb_hbm.at[pl.ds(tok, 1), :],
            x_halo.at[b_local, pl.ds(j, 1), :],
            sem)

    def _start_body(b_local):
        def body(j, carry):
            _row_copy(b_local, j).start()
            return carry
        return body

    def _wait_body(b_local):
        def body(j, carry):
            _row_copy(b_local, j).wait()
            return carry
        return body

    # Start every row DMA of this tile before waiting on any (overlap in-flight).
    for b_local in range(block_b):                    # static unroll over batch rows
        lax.fori_loop(0, H, _start_body(b_local), 0)
    for b_local in range(block_b):
        lax.fori_loop(0, H, _wait_body(b_local), 0)

    # ---- zero-mask halo rows outside [0, S) ('same' conv zero padding) -------
    pos = si * tS + lax.broadcasted_iota(jnp.int32, (block_b, H, E_pad), 1) - L
    xh = x_halo[...]
    x = jnp.where(jnp.logical_and(pos >= 0, pos < S), xh, jnp.zeros_like(xh))

    # ---- all conv branches as per-tap MXU matmuls, f32 accumulation ----------
    # Tap t of the fused weight reads x at sequence offset (s + t - L); with the
    # halo layout that is just the static slice x[:, t:t+tS, :].
    conv = jnp.zeros((block_b * tS, F3_pad), jnp.float32)
    for t in range(Kmax):                             # static unroll
        xt = x[:, t:t + tS, :].reshape(block_b * tS, E_pad)
        conv = conv + jnp.dot(xt, wconv_ref[t * E_pad:(t + 1) * E_pad, :],
                              preferred_element_type=jnp.float32)

    # ---- bias + ReLU + running max over this sequence tile (f32, VPU/XLU) ----
    h = jnp.maximum(conv + bconv_ref[...], 0.0)                   # (Bb*tS, F3p)
    tile_max = jnp.max(h.reshape(block_b, tS, F3_pad), axis=1)    # (Bb, F3p)
    pooled_ref[...] = jnp.maximum(pooled_ref[...], tile_max)

    # ---- final Linear on the last sequence tile -------------------------------
    @pl.when(si == n_seq - 1)
    def _():
        logits = jnp.dot(pooled_ref[...].astype(cdt), wfc_ref[...],
                         preferred_element_type=jnp.float32) + bfc_ref[...]
        o_ref[0] = logits.astype(o_ref.dtype)


def _pack_conv_weights(ws, bs, kernels, E, F, E_pad, F3_pad, dtype):
    """Pack torch-layout conv weights (F, E, k) into one (Kmax*E_pad, F3_pad).

    Branch i with kernel k_i and left pad L_i=(k_i-1)//2 has its tap j placed
    at common tap t = (Lmax - L_i) + j; all other taps (and all padding rows /
    columns) are zero, so one fused per-tap matmul computes every branch.
    """
    Kmax = max(kernels)
    Lmax = (Kmax - 1) // 2
    nb = len(ws)
    F3 = nb * F
    taps = []
    for t in range(Kmax):
        blocks = []
        for w, k in zip(ws, kernels):
            j = t - (Lmax - (k - 1) // 2)
            if 0 <= j < k:
                blocks.append(jnp.transpose(w[:, :, j], (1, 0)))   # (E, F)
            else:
                blocks.append(jnp.zeros((E, F), jnp.float32))
        tap = jnp.concatenate(blocks, axis=1)                      # (E, 3F)
        tap = jnp.pad(tap, ((0, E_pad - E), (0, F3_pad - F3)))
        taps.append(tap)
    wpacked = jnp.concatenate(taps, axis=0).astype(dtype)          # (Kmax*E_pad, F3_pad)
    bpacked = jnp.pad(jnp.concatenate(bs).reshape(1, F3),
                      ((0, 0), (0, F3_pad - F3)))                  # (1, F3_pad) f32
    return wpacked, bpacked


def textcnn_forward(tokens, params, kernels, *, compute_dtype=jnp.bfloat16,
                    block_b=None, seq_tile=None):
    """tokens: (B, S) int32.  params: dict of f32 weights.  Returns (B, C) f32."""
    B, S = tokens.shape
    emb = params['emb']                                  # (V+1, E)
    V1, E = emb.shape
    F = params['w1'].shape[0]
    C = params['wfc'].shape[0]
    Kmax = max(kernels)
    F3 = 3 * F

    E_pad = _round_up(E, 128)
    F3_pad = _round_up(F3, 128)
    C_pad = _round_up(C, 128)

    # ---- one-time weight packing / lane padding (model-load-time work) -------
    wconv, bconv = _pack_conv_weights(
        [params['w1'], params['w2'], params['w3']],
        [params['b1'], params['b2'], params['b3']],
        kernels, E, F, E_pad, F3_pad, compute_dtype)
    emb_p = jnp.pad(emb, ((0, 0), (0, E_pad - E))).astype(compute_dtype)
    wfc = jnp.pad(jnp.transpose(params['wfc'], (1, 0)),
                  ((0, F3_pad - F3), (0, C_pad - C))).astype(compute_dtype)
    bfc = jnp.pad(params['bfc'].reshape(1, C), ((0, 0), (0, C_pad - C)))  # f32

    # ---- tiling ---------------------------------------------------------------
    # Batch: >= 2 grid steps whenever B >= 2 so v7x's two TensorCores both work.
    if block_b is None:
        block_b = 1
        for cand in (8, 4, 2, 1):
            if B % cand == 0 and B // cand >= 2:
                block_b = cand
                break
    # Sequence: multiple-of-8 tile dividing S (bounds VMEM footprint, gives the
    # BlockSpec pipeline depth); falls back to the whole sequence otherwise.
    if seq_tile is None:
        seq_tile = S
        if S % 8 == 0 and S > 8:
            target = max(8, min(256, S // 2))
            for cand in range(target - target % 8, 7, -8):
                if S % cand == 0:
                    seq_tile = cand
                    break
    assert B % block_b == 0 and S % seq_tile == 0
    nb, ns = B // block_b, S // seq_tile
    H = seq_tile + Kmax - 1

    kernel = functools.partial(_textcnn_kernel, block_b, seq_tile, S,
                               E_pad, F3_pad, Kmax, V1)

    grid_spec = pltpu.PrefetchScalarGridSpec(
        num_scalar_prefetch=1,                                   # tokens -> SMEM
        grid=(nb, ns),
        in_specs=[
            pl.BlockSpec(memory_space=pl.ANY),                   # emb table (HBM)
            pl.BlockSpec(wconv.shape, lambda i, s, tok: (0, 0)),  # packed conv W
            pl.BlockSpec(bconv.shape, lambda i, s, tok: (0, 0)),  # conv biases
            pl.BlockSpec(wfc.shape, lambda i, s, tok: (0, 0)),    # FC weight
            pl.BlockSpec(bfc.shape, lambda i, s, tok: (0, 0)),    # FC bias
        ],
        out_specs=pl.BlockSpec((1, block_b, C_pad), lambda i, s, tok: (i, 0, 0)),
        scratch_shapes=[
            pltpu.VMEM((block_b, H, E_pad), compute_dtype),       # x + halo
            pltpu.VMEM((block_b, F3_pad), jnp.float32),           # running max
            pltpu.SemaphoreType.DMA,                              # row-gather sem
        ],
    )

    itemsize = jnp.dtype(compute_dtype).itemsize
    tile_bytes = (block_b * H * E_pad * itemsize                  # x_halo
                  + block_b * F3_pad * 4                          # running max
                  + 3 * block_b * seq_tile * F3_pad * 4           # conv/h temps
                  + 2 * block_b * C_pad * 4                       # out block (x2 buf)
                  + 2 * (wconv.size + wfc.size) * itemsize        # weights (x2 buf)
                  + 2 * (bconv.size + bfc.size) * 4)
    vmem_limit = int(min(64 * 1024 * 1024, max(4 * tile_bytes, 32 * 1024 * 1024)))

    flops = 2 * B * S * Kmax * E_pad * F3_pad + 2 * B * F3_pad * C_pad
    bytes_accessed = (4 * B * S
                      + B * S * E_pad * itemsize
                      + (wconv.size + wfc.size) * itemsize
                      + (bconv.size + bfc.size) * 4
                      + B * C_pad * 4)

    out = pl.pallas_call(
        kernel,
        out_shape=jax.ShapeDtypeStruct((nb, block_b, C_pad), jnp.float32),
        grid_spec=grid_spec,
        compiler_params=pltpu.CompilerParams(
            dimension_semantics=("parallel", "arbitrary"),
            vmem_limit_bytes=vmem_limit),
        cost_estimate=pl.CostEstimate(flops=int(flops), transcendentals=0,
                                      bytes_accessed=int(bytes_accessed)),
    )(tokens.astype(jnp.int32), emb_p, wconv, bconv, wfc, bfc)

    return out.reshape(B, C_pad)[:, :C]


def textcnn_reference(tokens, params, kernels):
    """Pure-JAX reference mirroring the PyTorch forward (NCW conv, f32)."""
    x = params['emb'][tokens]                          # (B, S, E)
    x = jnp.transpose(x, (0, 2, 1))                    # (B, E, S)  == NCW

    def branch(w, b):
        y = jax.lax.conv_general_dilated(
            x, w, window_strides=(1,), padding='SAME',
            dimension_numbers=('NCH', 'OIH', 'NCH'))
        y = y + b[None, :, None]
        y = jnp.maximum(y, 0.0)
        return jnp.max(y, axis=2)                      # (B, F)

    h = jnp.concatenate([branch(params['w1'], params['b1']),
                         branch(params['w2'], params['b2']),
                         branch(params['w3'], params['b3'])], axis=1)
    return h @ params['wfc'].T + params['bfc']


def init_params(key, num_embeddings, embedding_dim, num_filters, kernels,
                num_classes):
    ks = jax.random.split(key, 9)
    E, F, C = embedding_dim, num_filters, num_classes
    return {
        'emb': jax.random.normal(ks[0], (num_embeddings + 1, E), jnp.float32) * 0.1,
        'w1': jax.random.normal(ks[1], (F, E, kernels[0]), jnp.float32) * 0.05,
        'b1': jax.random.normal(ks[2], (F,), jnp.float32) * 0.01,
        'w2': jax.random.normal(ks[3], (F, E, kernels[1]), jnp.float32) * 0.05,
        'b2': jax.random.normal(ks[4], (F,), jnp.float32) * 0.01,
        'w3': jax.random.normal(ks[5], (F, E, kernels[2]), jnp.float32) * 0.05,
        'b3': jax.random.normal(ks[6], (F,), jnp.float32) * 0.01,
        'wfc': jax.random.normal(ks[7], (C, 3 * F), jnp.float32) * 0.05,
        'bfc': jax.random.normal(ks[8], (C,), jnp.float32) * 0.01,
    }


if __name__ == "__main__":
    num_embeddings = 50
    embedding_dim = 32
    num_filters = 16
    kernels = [3, 4, 5]
    num_classes = 8
    B, S = 2, 16

    key = jax.random.PRNGKey(0)
    kp, kt = jax.random.split(key)
    params = init_params(kp, num_embeddings, embedding_dim, num_filters,
                         kernels, num_classes)
    tokens = jax.random.randint(kt, (B, S), 0, num_embeddings + 1,
                                dtype=jnp.int32)

    ref = jax.block_until_ready(textcnn_reference(tokens, params, kernels))

    # Exact-path check (f32 MXU operands) against the PyTorch-equivalent ref.
    out_f32 = jax.block_until_ready(
        textcnn_forward(tokens, params, kernels, compute_dtype=jnp.float32))
    assert out_f32.shape == (B, num_classes)
    assert jnp.allclose(out_f32, ref, atol=1e-4, rtol=1e-4), (out_f32, ref)

    # Default fast path: bf16 MXU operands, f32 accumulation & elementwise.
    out = jax.block_until_ready(textcnn_forward(tokens, params, kernels))
    assert out.shape == (B, num_classes)
    assert jnp.allclose(out, ref, atol=2e-2, rtol=2e-2), (out, ref)

    print("KERNEL_OK")
</pallas_src>

<mosaic_0001>
module attributes {stable_mosaic.version = 11 : i64} {
  func.func @_textcnn_kernel(%arg0: i32, %arg1: i32, %arg2: memref<2x16xi32, #tpu.memory_space<smem>>, %arg3: memref<51x128xf32, #tpu.memory_space<any>>, %arg4: memref<640x128xf32, #tpu.memory_space<vmem>>, %arg5: memref<1x128xf32, #tpu.memory_space<vmem>>, %arg6: memref<128x128xf32, #tpu.memory_space<vmem>>, %arg7: memref<1x128xf32, #tpu.memory_space<vmem>>, %arg8: memref<1x1x128xf32, #tpu.memory_space<vmem>>, %arg9: memref<1x12x128xf32, #tpu.memory_space<vmem>>, %arg10: memref<1x128xf32, #tpu.memory_space<vmem>>, %arg11: memref<!tpu.dma_semaphore, #tpu.memory_space<semaphore_mem>>) attributes {dimension_semantics = [#tpu.dimension_semantics<parallel>, #tpu.dimension_semantics<arbitrary>], iteration_bounds = array<i64: 2, 2>, scalar_prefetch = 1 : i64, scratch_operands = 3 : i64, tpu.core_type = #tpu.core_type<tc>, window_params = [{}, {pipeline_mode = #tpu.pipeline_mode<synchronous>, transform_indices = @transform_1, window_bounds = array<i64: 640, 128>}, {pipeline_mode = #tpu.pipeline_mode<synchronous>, transform_indices = @transform_2, window_bounds = array<i64: 1, 128>}, {pipeline_mode = #tpu.pipeline_mode<synchronous>, transform_indices = @transform_3, window_bounds = array<i64: 128, 128>}, {pipeline_mode = #tpu.pipeline_mode<synchronous>, transform_indices = @transform_4, window_bounds = array<i64: 1, 128>}, {transform_indices = @transform_5, window_bounds = array<i64: 1, 1, 128>}]} {
    %c0_i32 = arith.constant 0 : i32
    %0 = arith.cmpi eq, %arg1, %c0_i32 : i32
    %1 = arith.extui %0 : i1 to i32
    %c0_i32_0 = arith.constant 0 : i32
    %2 = arith.cmpi ne, %1, %c0_i32_0 : i32
    scf.if %2 {
      %cst_32 = arith.constant 0.000000e+00 : f32
      %58 = vector.broadcast %cst_32 : f32 to vector<1x128xf32>
      %c0_33 = arith.constant 0 : index
      %c0_34 = arith.constant 0 : index
      %59 = vector.load %arg10[%c0_33, %c0_34] : memref<1x128xf32, #tpu.memory_space<vmem>>, vector<1x128xf32>
      tpu.vector_store %arg10[%c0_33, %c0_34], %58 {strides = array<i32>} : memref<1x128xf32, #tpu.memory_space<vmem>>, vector<1x128xf32>,
    } else {
    }
    %c0_i32_1 = arith.constant 0 : i32
    %c12_i32 = arith.constant 12 : i32
    %3 = arith.addi %c0_i32_1, %c12_i32 : i32
    %c1_i32 = arith.constant 1 : i32
    scf.for %arg12 = %c0_i32_1 to %3 step %c1_i32  : i32 {
      %c8_i32_32 = arith.constant 8 : i32
      %58 = arith.muli %arg1, %c8_i32_32 : i32
      %59 = arith.addi %58, %arg12 : i32
      %c2_i32_33 = arith.constant 2 : i32
      %60 = arith.subi %59, %c2_i32_33 : i32
      %c0_i32_34 = arith.constant 0 : i32
      %c15_i32 = arith.constant 15 : i32
      %61 = arith.maxsi %c0_i32_34, %60 : i32
      %62 = arith.minsi %c15_i32, %61 : i32
      %c1_i32_35 = arith.constant 1 : i32
      %63 = arith.muli %arg0, %c1_i32_35 : i32
      %c0_i32_36 = arith.constant 0 : i32
      %64 = arith.addi %63, %c0_i32_36 : i32
      %65 = arith.index_cast %64 : i32 to index
      %66 = arith.index_cast %62 : i32 to index
      %67 = memref.load %arg2[%65, %66] : memref<2x16xi32, #tpu.memory_space<smem>>
      %c0_i32_37 = arith.constant 0 : i32
      %c50_i32 = arith.constant 50 : i32
      %68 = arith.maxsi %c0_i32_37, %67 : i32
      %69 = arith.minsi %c50_i32, %68 : i32
      %c0_i32_38 = arith.constant 0 : i32
      %c0_i32_39 = arith.constant 0 : i32
      %70 = tpu.memref_slice %arg3[%69, %c0_i32_39] : memref<51x128xf32, #tpu.memory_space<any>> -> memref<1x128xf32, #tpu.memory_space<any>>
      %c0_i32_40 = arith.constant 0 : i32
      %71 = tpu.memref_slice %arg9[%c0_i32_38, %arg12, %c0_i32_40] : memref<1x12x128xf32, #tpu.memory_space<vmem>> -> memref<1x1x128xf32, #tpu.memory_space<vmem>>
      %72 = tpu.memref_squeeze %71 : memref<1x1x128xf32, #tpu.memory_space<vmem>> -> memref<1x128xf32, #tpu.memory_space<vmem>>
      tpu.enqueue_dma source(%70 : memref<1x128xf32, #tpu.memory_space<any>>) target(%72 : memref<1x128xf32, #tpu.memory_space<vmem>>) target_semaphore(%arg11 : memref<!tpu.dma_semaphore, #tpu.memory_space<semaphore_mem>>)
    }
    %c12_i32_2 = arith.constant 12 : i32
    %c0_i32_3 = arith.constant 0 : i32
    %c12_i32_4 = arith.constant 12 : i32
    %4 = arith.addi %c0_i32_3, %c12_i32_4 : i32
    %c1_i32_5 = arith.constant 1 : i32
    scf.for %arg12 = %c0_i32_3 to %4 step %c1_i32_5  : i32 {
      %c8_i32_32 = arith.constant 8 : i32
      %58 = arith.muli %arg1, %c8_i32_32 : i32
      %59 = arith.addi %58, %arg12 : i32
      %c2_i32_33 = arith.constant 2 : i32
      %60 = arith.subi %59, %c2_i32_33 : i32
      %c0_i32_34 = arith.constant 0 : i32
      %c15_i32 = arith.constant 15 : i32
      %61 = arith.maxsi %c0_i32_34, %60 : i32
      %62 = arith.minsi %c15_i32, %61 : i32
      %c1_i32_35 = arith.constant 1 : i32
      %63 = arith.muli %arg0, %c1_i32_35 : i32
      %c0_i32_36 = arith.constant 0 : i32
      %64 = arith.addi %63, %c0_i32_36 : i32
      %65 = arith.index_cast %64 : i32 to index
      %66 = arith.index_cast %62 : i32 to index
      %67 = memref.load %arg2[%65, %66] : memref<2x16xi32, #tpu.memory_space<smem>>
      %c0_i32_37 = arith.constant 0 : i32
      %c50_i32 = arith.constant 50 : i32
      %68 = arith.maxsi %c0_i32_37, %67 : i32
      %69 = arith.minsi %c50_i32, %68 : i32
      %c0_i32_38 = arith.constant 0 : i32
      %c0_i32_39 = arith.constant 0 : i32
      %70 = tpu.memref_slice %arg3[%69, %c0_i32_39] : memref<51x128xf32, #tpu.memory_space<any>> -> memref<1x128xf32, #tpu.memory_space<any>>
      %c0_i32_40 = arith.constant 0 : i32
      %71 = tpu.memref_slice %arg9[%c0_i32_38, %arg12, %c0_i32_40] : memref<1x12x128xf32, #tpu.memory_space<vmem>> -> memref<1x1x128xf32, #tpu.memory_space<vmem>>
      %72 = tpu.memref_squeeze %71 : memref<1x1x128xf32, #tpu.memory_space<vmem>> -> memref<1x128xf32, #tpu.memory_space<vmem>>
      tpu.wait_dma2 semaphore(%arg11 : memref<!tpu.dma_semaphore, #tpu.memory_space<semaphore_mem>>) src(%70 : memref<1x128xf32, #tpu.memory_space<any>>) dst(%72 : memref<1x128xf32, #tpu.memory_space<vmem>>)
    }
    %c12_i32_6 = arith.constant 12 : i32
    %c8_i32 = arith.constant 8 : i32
    %5 = arith.muli %arg1, %c8_i32 : i32
    %6 = tpu.iota {dimensions = array<i32: 1>} : vector<1x12x128xi32>
    %7 = vector.broadcast %5 : i32 to vector<1x12x128xi32>
    %8 = arith.addi %7, %6 : vector<1x12x128xi32>
    %c2_i32 = arith.constant 2 : i32
    %9 = vector.broadcast %c2_i32 : i32 to vector<1x12x128xi32>
    %10 = arith.subi %8, %9 : vector<1x12x128xi32>
    %c0 = arith.constant 0 : index
    %c0_7 = arith.constant 0 : index
    %c0_8 = arith.constant 0 : index
    %11 = vector.load %arg9[%c0, %c0_7, %c0_8] : memref<1x12x128xf32, #tpu.memory_space<vmem>>, vector<1x12x128xf32>
    %c0_i32_9 = arith.constant 0 : i32
    %12 = vector.broadcast %c0_i32_9 : i32 to vector<1x12x128xi32>
    %13 = arith.cmpi sge, %10, %12 : vector<1x12x128xi32>
    %c16_i32 = arith.constant 16 : i32
    %14 = vector.broadcast %c16_i32 : i32 to vector<1x12x128xi32>
    %15 = arith.cmpi slt, %10, %14 : vector<1x12x128xi32>
    %16 = arith.andi %13, %15 : vector<1x12x128xi1>
    %cst = arith.constant 0.000000e+00 : f32
    %17 = vector.broadcast %cst : f32 to vector<1x12x128xf32>
    %18 = arith.select %16, %11, %17 : vector<1x12x128xi1>, vector<1x12x128xf32>
    %cst_10 = arith.constant 0.000000e+00 : f32
    %19 = vector.broadcast %cst_10 : f32 to vector<8x128xf32>
    %20 = vector.extract_strided_slice %18 {offsets = [0, 0, 0], sizes = [1, 8, 128], strides = [1, 1, 1]} : vector<1x12x128xf32> to vector<1x8x128xf32>
    %21 = vector.shape_cast %20 : vector<1x8x128xf32> to vector<8x128xf32>
    %c0_11 = arith.constant 0 : index
    %c0_12 = arith.constant 0 : index
    %22 = vector.load %arg4[%c0_11, %c0_12] : memref<640x128xf32, #tpu.memory_space<vmem>>, vector<128x128xf32>
    %cst_13 = arith.constant dense<0.000000e+00> : vector<8x128xf32>
    %23 = tpu.matmul %21, %22, %cst_13 {dimension_numbers = #tpu.dot_dimension_numbers<[1], [0], [0], [1], [0, 0, 1, 1], [], []>} : vector<8x128xf32>, vector<128x128xf32>, vector<8x128xf32> -> vector<8x128xf32>
    %24 = arith.addf %19, %23 : vector<8x128xf32>
    %25 = vector.extract_strided_slice %18 {offsets = [0, 1, 0], sizes = [1, 8, 128], strides = [1, 1, 1]} : vector<1x12x128xf32> to vector<1x8x128xf32>
    %26 = vector.shape_cast %25 : vector<1x8x128xf32> to vector<8x128xf32>
    %c128 = arith.constant 128 : index
    %c0_14 = arith.constant 0 : index
    %27 = vector.load %arg4[%c128, %c0_14] : memref<640x128xf32, #tpu.memory_space<vmem>>, vector<128x128xf32>
    %cst_15 = arith.constant dense<0.000000e+00> : vector<8x128xf32>
    %28 = tpu.matmul %26, %27, %cst_15 {dimension_numbers = #tpu.dot_dimension_numbers<[1], [0], [0], [1], [0, 0, 1, 1], [], []>} : vector<8x128xf32>, vector<128x128xf32>, vector<8x128xf32> -> vector<8x128xf32>
    %29 = arith.addf %24, %28 : vector<8x128xf32>
    %30 = vector.extract_strided_slice %18 {offsets = [0, 2, 0], sizes = [1, 8, 128], strides = [1, 1, 1]} : vector<1x12x128xf32> to vector<1x8x128xf32>
    %31 = vector.shape_cast %30 : vector<1x8x128xf32> to vector<8x128xf32>
    %c256 = arith.constant 256 : index
    %c0_16 = arith.constant 0 : index
    %32 = vector.load %arg4[%c256, %c0_16] : memref<640x128xf32, #tpu.memory_space<vmem>>, vector<128x128xf32>
    %cst_17 = arith.constant dense<0.000000e+00> : vector<8x128xf32>
    %33 = tpu.matmul %31, %32, %cst_17 {dimension_numbers = #tpu.dot_dimension_numbers<[1], [0], [0], [1], [0, 0, 1, 1], [], []>} : vector<8x128xf32>, vector<128x128xf32>, vector<8x128xf32> -> vector<8x128xf32>
    %34 = arith.addf %29, %33 : vector<8x128xf32>
    %35 = vector.extract_strided_slice %18 {offsets = [0, 3, 0], sizes = [1, 8, 128], strides = [1, 1, 1]} : vector<1x12x128xf32> to vector<1x8x128xf32>
    %36 = vector.shape_cast %35 : vector<1x8x128xf32> to vector<8x128xf32>
    %c384 = arith.constant 384 : index
    %c0_18 = arith.constant 0 : index
    %37 = vector.load %arg4[%c384, %c0_18] : memref<640x128xf32, #tpu.memory_space<vmem>>, vector<128x128xf32>
    %cst_19 = arith.constant dense<0.000000e+00> : vector<8x128xf32>
    %38 = tpu.matmul %36, %37, %cst_19 {dimension_numbers = #tpu.dot_dimension_numbers<[1], [0], [0], [1], [0, 0, 1, 1], [], []>} : vector<8x128xf32>, vector<128x128xf32>, vector<8x128xf32> -> vector<8x128xf32>
    %39 = arith.addf %34, %38 : vector<8x128xf32>
    %40 = vector.extract_strided_slice %18 {offsets = [0, 4, 0], sizes = [1, 8, 128], strides = [1, 1, 1]} : vector<1x12x128xf32> to vector<1x8x128xf32>
    %41 = vector.shape_cast %40 : vector<1x8x128xf32> to vector<8x128xf32>
    %c512 = arith.constant 512 : index
    %c0_20 = arith.constant 0 : index
    %42 = vector.load %arg4[%c512, %c0_20] : memref<640x128xf32, #tpu.memory_space<vmem>>, vector<128x128xf32>
    %cst_21 = arith.constant dense<0.000000e+00> : vector<8x128xf32>
    %43 = tpu.matmul %41, %42, %cst_21 {dimension_numbers = #tpu.dot_dimension_numbers<[1], [0], [0], [1], [0, 0, 1, 1], [], []>} : vector<8x128xf32>, vector<128x128xf32>, vector<8x128xf32> -> vector<8x128xf32>
    %44 = arith.addf %39, %43 : vector<8x128xf32>
    %c0_22 = arith.constant 0 : index
    %c0_23 = arith.constant 0 : index
    %45 = vector.load %arg5[%c0_22, %c0_23] : memref<1x128xf32, #tpu.memory_space<vmem>>, vector<1x128xf32>
    %46 = vector.broadcast %45 : vector<1x128xf32> to vector<8x128xf32>
    %47 = arith.addf %44, %46 : vector<8x128xf32>
    %cst_24 = arith.constant 0.000000e+00 : f32
    %48 = vector.broadcast %cst_24 : f32 to vector<8x128xf32>
    %49 = arith.maximumf %47, %48 : vector<8x128xf32>
    %50 = vector.shape_cast %49 : vector<8x128xf32> to vector<1x8x128xf32>
    %cst_25 = arith.constant dense<0xFF800000> : vector<1x128xf32>
    %51 = vector.multi_reduction <maximumf>, %50, %cst_25 [1] : vector<1x8x128xf32> to vector<1x128xf32>
    %c0_26 = arith.constant 0 : index
    %c0_27 = arith.constant 0 : index
    %52 = vector.load %arg10[%c0_26, %c0_27] : memref<1x128xf32, #tpu.memory_space<vmem>>, vector<1x128xf32>
    %53 = arith.maximumf %52, %51 : vector<1x128xf32>
    %c0_28 = arith.constant 0 : index
    %c0_29 = arith.constant 0 : index
    %54 = vector.load %arg10[%c0_28, %c0_29] : memref<1x128xf32, #tpu.memory_space<vmem>>, vector<1x128xf32>
    tpu.vector_store %arg10[%c0_28, %c0_29], %53 {strides = array<i32>} : memref<1x128xf32, #tpu.memory_space<vmem>>, vector<1x128xf32>,
    %c1_i32_30 = arith.constant 1 : i32
    %55 = arith.cmpi eq, %arg1, %c1_i32_30 : i32
    %56 = arith.extui %55 : i1 to i32
    %c0_i32_31 = arith.constant 0 : i32
    %57 = arith.cmpi ne, %56, %c0_i32_31 : i32
    scf.if %57 {
      %c0_32 = arith.constant 0 : index
      %c0_33 = arith.constant 0 : index
      %58 = vector.load %arg10[%c0_32, %c0_33] : memref<1x128xf32, #tpu.memory_space<vmem>>, vector<1x128xf32>
      %c0_34 = arith.constant 0 : index
      %c0_35 = arith.constant 0 : index
      %59 = vector.load %arg6[%c0_34, %c0_35] : memref<128x128xf32, #tpu.memory_space<vmem>>, vector<128x128xf32>
      %cst_36 = arith.constant dense<0.000000e+00> : vector<1x128xf32>
      %60 = tpu.matmul %58, %59, %cst_36 {dimension_numbers = #tpu.dot_dimension_numbers<[1], [0], [0], [1], [0, 0, 1, 1], [], []>} : vector<1x128xf32>, vector<128x128xf32>, vector<1x128xf32> -> vector<1x128xf32>
      %c0_37 = arith.constant 0 : index
      %c0_38 = arith.constant 0 : index
      %61 = vector.load %arg7[%c0_37, %c0_38] : memref<1x128xf32, #tpu.memory_space<vmem>>, vector<1x128xf32>
      %62 = arith.addf %60, %61 : vector<1x128xf32>
      %c0_39 = arith.constant 0 : index
      %c0_40 = arith.constant 0 : index
      %c0_41 = arith.constant 0 : index
      %63 = vector.load %arg8[%c0_39, %c0_40, %c0_41] : memref<1x1x128xf32, #tpu.memory_space<vmem>>, vector<1x1x128xf32>
      %64 = vector.shape_cast %63 : vector<1x1x128xf32> to vector<1x128xf32>
      %65 = vector.shape_cast %62 : vector<1x128xf32> to vector<1x1x128xf32>
      tpu.vector_store %arg8[%c0_39, %c0_40, %c0_41], %65 {strides = array<i32>} : memref<1x1x128xf32, #tpu.memory_space<vmem>>, vector<1x1x128xf32>,
    } else {
    }
    return
  }
  func.func @transform_1(%arg0: i32, %arg1: i32, %arg2: memref<2x16xi32, #tpu.memory_space<smem>>) -> (i32, i32) {
    %c0_i32 = arith.constant 0 : i32
    %c0_i32_0 = arith.constant 0 : i32
    %c0_i32_1 = arith.constant 0 : i32
    return %c0_i32, %c0_i32_0 : i32, i32
  }
  func.func @transform_2(%arg0: i32, %arg1: i32, %arg2: memref<2x16xi32, #tpu.memory_space<smem>>) -> (i32, i32) {
    %c0_i32 = arith.constant 0 : i32
    %c0_i32_0 = arith.constant 0 : i32
    %c0_i32_1 = arith.constant 0 : i32
    return %c0_i32, %c0_i32_0 : i32, i32
  }
  func.func @transform_3(%arg0: i32, %arg1: i32, %arg2: memref<2x16xi32, #tpu.memory_space<smem>>) -> (i32, i32) {
    %c0_i32 = arith.constant 0 : i32
    %c0_i32_0 = arith.constant 0 : i32
    %c0_i32_1 = arith.constant 0 : i32
    return %c0_i32, %c0_i32_0 : i32, i32
  }
  func.func @transform_4(%arg0: i32, %arg1: i32, %arg2: memref<2x16xi32, #tpu.memory_space<smem>>) -> (i32, i32) {
    %c0_i32 = arith.constant 0 : i32
    %c0_i32_0 = arith.constant 0 : i32
    %c0_i32_1 = arith.constant 0 : i32
    return %c0_i32, %c0_i32_0 : i32, i32
  }
  func.func @transform_5(%arg0: i32, %arg1: i32, %arg2: memref<2x16xi32, #tpu.memory_space<smem>>) -> (i32, i32, i32) {
    %c0_i32 = arith.constant 0 : i32
    %c0_i32_0 = arith.constant 0 : i32
    %c0_i32_1 = arith.constant 0 : i32
    return %arg0, %c0_i32, %c0_i32_0 : i32, i32, i32
  }
}

</mosaic_0001>

<llo_original>
// kernel: tpu_custom_call.1
$region0: #{tpu_custom_call.1}
  #allocation0 [shape = 'u32[]', space=smem, size = 0x4, offset = 0x4, fixed_abs, tag = 'smem constant byte address 0x4 - core index']
  #allocation1 [shape = 'u32[144,128]{1,0:T(1,128)}', space=vmem, size = 0x12000, scoped, tag = 'internal scratch']
  #allocation2 [shape = 'f32[1,12,128]{2,1,0:T(8,128)}', space=vmem, size = 0x2000, scoped, tag = 'scratch operand']
  #allocation3 [shape = 'f32[1,128]{1,0:T(1,128)}', space=vmem, size = 0x200, scoped, tag = 'scratch operand']
  #allocation4 [shape = 's32[1]{0}', space=sflag, size = 0x4, scoped, tag = 'scratch operand']
  #allocation5 [shape = 's32[1]{0}', space=sflag, size = 0x4, scoped, tag = 'scoped memory for tpu_custom_call.1']
  #allocation6 [shape = 'u8[1024]{0}', space=smem, size = 0x400, scoped, tag = 'prefetched SMEM operand 0']
  #allocation13 [shape = 's32[]', space=sflag, size = 0x4, offset = 0, fixed_abs, tag = 'sflag constant byte address 0x0 - dummy sync flag']
  #allocation14 [shape = 's32[]', space=sflag, size = 0x4, offset = 0, fixed_abs, tag = 'sflag constant byte address 0x0 - dummy sync flag']
  #allocation15 [shape = 'u32[]', space=smem, size = 0x4, offset = 0x44, fixed_abs, tag = 'smem constant byte address 0x44 - assertion arg 0']
  #allocation16 [shape = 'u32[]', space=smem, size = 0x4, offset = 0x48, fixed_abs, tag = 'smem constant byte address 0x48 - assertion arg 1']
  %s0 = inlined_call_operand.hbm [shape: s32[2,16], index: 0, kind: input, shape index: {}]
  %s1 = inlined_call_operand.hbm [shape: f32[51,128], index: 1, kind: input, shape index: {}]
  %s2 = inlined_call_operand.hbm [shape: f32[640,128], index: 2, kind: input, shape index: {}]
  %s3 = inlined_call_operand.vmem [shape: f32[1,128], index: 3, kind: input, shape index: {}]
  %s4 = inlined_call_operand.hbm [shape: f32[128,128], index: 4, kind: input, shape index: {}]
  %s5 = inlined_call_operand.vmem [shape: f32[1,128], index: 5, kind: input, shape index: {}]
  %s6 = inlined_call_operand.hbm [shape: f32[2,1,128], index: 6, kind: output, shape index: {}]
  %s7 = sld [smem:[#allocation0]]
  $region83: #{tpu_custom_call.1} parent=0
    _
  %s9 = ssub.s32 1, %s7
  %s10 = scalar_select 0, %s9, %s7
  %12 = dma.hbm_to_smem %s0, 32, [#allocation6], [#allocation5]
  %13 = dma.done [#allocation5], 32
  %14 = sfence
  $region1: #{tpu_custom_call.1} parent=0
    #allocation7 [shape = 'u8[327680]{0}', space=vmem, size = 0x50000, scoped, tag = 'input window, operand 2, single buffered']
    #allocation8 [shape = 's32[2]{0}', space=sflag, size = 0x8, scoped, tag = 'scoped memory for tpu_custom_call.1']
    #allocation9 [shape = 's32[2]{0}', space=sflag, size = 0x8, scoped, tag = 'scoped memory for tpu_custom_call.1']
    #allocation10 [shape = 'u8[65536]{0}', space=vmem, size = 0x10000, scoped, tag = 'input window, operand 4, single buffered']
    #allocation11 [shape = 's32[1]{0}', space=sflag, size = 0x4, scoped, tag = 'scoped memory for tpu_custom_call.1']
    #allocation12 [shape = 'u8[1024]{0}', space=vmem, size = 0x400, scoped, tag = 'output window, operand 0']
    %15 = vsyncpa [#allocation8], 0
    %16 = vsyncpa [#allocation11], 0
    %17 = vsyncpa [#allocation9], 0
    %s18 = scalar_lea.sflag [#allocation9], 1
    %19 = vsyncpa %s18, 0
    loop: start=0, step=1, limit=6
    $region2: #{tpu_custom_call.1} parent=1 // loop_pre_header
      _
    $region3: #{tpu_custom_call.1} parent=1 // loop_header
      %s21 = sphi 0, %s25
      %p22 = scmp.ge.s32.totalorder %s21, 6
      %s28 = sphi 0, %s40
      %s29 = sphi 0, %s36
      %s30 = sphi 0, %s28
      %s31 = sphi 0, %s29
      %s32 = sphi 0, %s30
      %s33 = sphi 0, %s31
      %s41 = sphi 0, %s41
      %s43 = sphi 0, %s41
      %s44 = sphi 0, %s43
      %s58 = sphi 0, %s44
      %s62 = sphi 0, %s62
      %s64 = sphi 0, %s62
      %s65 = sphi 0, %s64
      %s79 = sphi 0, %s65
      %s83 = sphi 0, %s83
      %s85 = sphi 0, %s83
      %s86 = sphi 0, %s85
      %s100 = sphi 0, %s86
      %s104 = sphi 0, %s104
      %s106 = sphi 0, %s104
      %s107 = sphi 0, %s106
      %s121 = sphi 0, %s107
      %s127 = sphi 0, %s129
      %s130 = sphi 0, %s127
      %s131 = sphi 0, %s130
      %s147 = sphi 0, %s131
    $region4: #{tpu_custom_call.1} parent=1 // loop_header_branch
      %24 = sbr.rel (%p22) target = $region8
    $region5: #{tpu_custom_call.1} parent=1 // loop_body
      %s26 = ssub.s32 %s21, 1
      %s27 = ssub.s32 %s21, 2
      %s34 = sadd.s32 1, %s29
      %p35 = scmp.ge.s32.totalorder %s34, 2
      %s36 = scalar_select %p35, 0, %s34
      %s37 = sadd.s32 1, %s28
      %s38 = scalar_select %p35, %s37, %s28
      %p39 = scmp.ge.s32.totalorder %s38, 2
      %s40 = scalar_select %p39, 0, %s38
      %s42 = sadd.s32 %s41, 1
      %p45 = scmp.eq.s32.totalorder %s21, 3
      %p46 = scmp.ne.s32.totalorder %s41, %s43
      %p47 = scmp.eq.s32.totalorder %s21, 0
      %p48 = por %p46, %p47
      %p49 = scmp.ne.s32.totalorder %s41, %s43
      %p50 = scmp.eq.s32.totalorder %s26, 3
      %p51 = por %p49, %p50
      %p52 = scmp.ne.s32.totalorder %s43, %s44
      %p53 = scmp.eq.s32.totalorder %s26, 0
      %p54 = por %p52, %p53
      %p55 = scmp.ne.s32.totalorder %s43, %s44
      %p56 = scmp.eq.s32.totalorder %s27, 3
      %p57 = por %p55, %p56
      %p59 = scmp.ne.s32.totalorder %s44, %s58
      %p60 = scmp.eq.s32.totalorder %s27, 0
      %p61 = por %p59, %p60
      %s63 = sadd.s32 %s62, 1
      %p66 = scmp.eq.s32.totalorder %s21, 3
      %p67 = scmp.ne.s32.totalorder %s62, %s64
      %p68 = scmp.eq.s32.totalorder %s21, 0
      %p69 = por %p67, %p68
      %p70 = scmp.ne.s32.totalorder %s62, %s64
      %p71 = scmp.eq.s32.totalorder %s26, 3
      %p72 = por %p70, %p71
      %p73 = scmp.ne.s32.totalorder %s64, %s65
      %p74 = scmp.eq.s32.totalorder %s26, 0
      %p75 = por %p73, %p74
      %p76 = scmp.ne.s32.totalorder %s64, %s65
      %p77 = scmp.eq.s32.totalorder %s27, 3
      %p78 = por %p76, %p77
      %p80 = scmp.ne.s32.totalorder %s65, %s79
      %p81 = scmp.eq.s32.totalorder %s27, 0
      %p82 = por %p80, %p81
      %s84 = sadd.s32 %s83, 1
      %p87 = scmp.eq.s32.totalorder %s21, 3
      %p88 = scmp.ne.s32.totalorder %s83, %s85
      %p89 = scmp.eq.s32.totalorder %s21, 0
      %p90 = por %p88, %p89
      %p91 = scmp.ne.s32.totalorder %s83, %s85
      %p92 = scmp.eq.s32.totalorder %s26, 3
      %p93 = por %p91, %p92
      %p94 = scmp.ne.s32.totalorder %s85, %s86
      %p95 = scmp.eq.s32.totalorder %s26, 0
      %p96 = por %p94, %p95
      %p97 = scmp.ne.s32.totalorder %s85, %s86
      %p98 = scmp.eq.s32.totalorder %s27, 3
      %p99 = por %p97, %p98
      %p101 = scmp.ne.s32.totalorder %s86, %s100
      %p102 = scmp.eq.s32.totalorder %s27, 0
      %p103 = por %p101, %p102
      %s105 = sadd.s32 %s104, 1
      %p108 = scmp.eq.s32.totalorder %s21, 3
      %p109 = scmp.ne.s32.totalorder %s104, %s106
      %p110 = scmp.eq.s32.totalorder %s21, 0
      %p111 = por %p109, %p110
      %p112 = scmp.ne.s32.totalorder %s104, %s106
      %p113 = scmp.eq.s32.totalorder %s26, 3
      %p114 = por %p112, %p113
      %p115 = scmp.ne.s32.totalorder %s106, %s107
      %p116 = scmp.eq.s32.totalorder %s26, 0
      %p117 = por %p115, %p116
      %p118 = scmp.ne.s32.totalorder %s106, %s107
      %p119 = scmp.eq.s32.totalorder %s27, 3
      %p120 = por %p118, %p119
      %p122 = scmp.ne.s32.totalorder %s107, %s121
      %p123 = scmp.eq.s32.totalorder %s27, 0
      %p124 = por %p122, %p123
      %s125 = ssub.s32 %s28, %s40
      %p126 = scmp.eq.s32.totalorder %s125, 0
      %s128 = sadd.s32 %s127, 1
      %s129 = scalar_select %p126, %s127, %s128
      %p132 = pneg %p126
      %p133 = scmp.eq.s32.totalorder %s21, 3
      %p134 = por %p132, %p133
      %p135 = scmp.ne.s32.totalorder %s127, %s130
      %p136 = scmp.eq.s32.totalorder %s21, 0
      %p137 = por %p135, %p136
      %p138 = scmp.ne.s32.totalorder %s127, %s130
      %p139 = scmp.eq.s32.totalorder %s26, 3
      %p140 = por %p138, %p139
      %p141 = scmp.ne.s32.totalorder %s130, %s131
      %p142 = scmp.eq.s32.totalorder %s26, 0
      %p143 = por %p141, %p142
      %p144 = scmp.ne.s32.totalorder %s130, %s131
      %p145 = scmp.eq.s32.totalorder %s27, 3
      %p146 = por %p144, %p145
      %p148 = scmp.ne.s32.totalorder %s131, %s147
      %p149 = scmp.eq.s32.totalorder %s27, 0
      %p150 = por %p148, %p149
      %p151 = scmp.le.s32.totalorder 1, %s21
      %p152 = scmp.lt.s32.totalorder %s21, 5
      %p153 = pnand %p151, %p152
      %p154 = pneg %p153
      // Predicated region
      $region9: #{tpu_custom_call.1} parent=5 // pred_check
        _
      $region10: #{tpu_custom_call.1} parent=5 // pred_check_branch
        %156 = sbr.rel (%p153) target = $region12
      $region11: #{tpu_custom_call.1} parent=5 // pred_region
        %s157 = ssub.s32 %s21, 1
        // Predicated region
        $region13: #{tpu_custom_call.1} parent=11 // pred_check
          %p158 = pneg %p54
        $region14: #{tpu_custom_call.1} parent=11 // pred_check_branch
          %160 = sbr.rel (%p158) target = $region16
        $region15: #{tpu_custom_call.1} parent=11 // pred_region
          %s162 = ssub.s32 10240, 10240
          %163 = vsyncadd [#allocation8], %s162
          %s164 = sshll.u32 [#allocation7], 4
          %s165 = int_to_ptr.vmem [resolvable:$true] %s164
          %170 = dma.hbm_to_vmem [thread:$0]  %s2, 10240, %s165, [#allocation8], 128, 128, 8
        $region16: #{tpu_custom_call.1} parent=11 // pred_fallthru
          _
        // Predicated region
        $region17: #{tpu_custom_call.1} parent=11 // pred_check
          %p171 = pneg %p75
        $region18: #{tpu_custom_call.1} parent=11 // pred_check_branch
          %173 = sbr.rel (%p171) target = $region20
        $region19: #{tpu_custom_call.1} parent=11 // pred_region
          _
        $region20: #{tpu_custom_call.1} parent=11 // pred_fallthru
          _
        // Predicated region
        $region21: #{tpu_custom_call.1} parent=11 // pred_check
          %p174 = pneg %p96
        $region22: #{tpu_custom_call.1} parent=11 // pred_check_branch
          %176 = sbr.rel (%p174) target = $region24
        $region23: #{tpu_custom_call.1} parent=11 // pred_region
          %s178 = ssub.s32 2048, 2048
          %179 = vsyncadd [#allocation11], %s178
          %s180 = sshll.u32 [#allocation10], 4
          %s181 = int_to_ptr.vmem [resolvable:$true] %s180
          %186 = dma.hbm_to_vmem [thread:$0]  %s4, 2048, %s181, [#allocation11], 128, 128, 8
        $region24: #{tpu_custom_call.1} parent=11 // pred_fallthru
          _
        // Predicated region
        $region25: #{tpu_custom_call.1} parent=11 // pred_check
          %p187 = pneg %p117
        $region26: #{tpu_custom_call.1} parent=11 // pred_check_branch
          %189 = sbr.rel (%p187) target = $region28
        $region27: #{tpu_custom_call.1} parent=11 // pred_region
          _
        $region28: #{tpu_custom_call.1} parent=11 // pred_fallthru
          _
      $region12: #{tpu_custom_call.1} parent=5 // pred_fallthru
        _
      %p190 = scmp.lt.s32.totalorder %s21, 4
      // Predicated region
      $region29: #{tpu_custom_call.1} parent=5 // pred_check
        %p191 = pneg %p190
      $region30: #{tpu_custom_call.1} parent=5 // pred_check_branch
        %193 = sbr.rel (%p191) target = $region32
      $region31: #{tpu_custom_call.1} parent=5 // pred_region
        _
      $region32: #{tpu_custom_call.1} parent=5 // pred_fallthru
        _
      %p194 = scmp.le.s32.totalorder 1, %s21
      %p195 = scmp.lt.s32.totalorder %s21, 5
      %p196 = pnand %p194, %p195
      %p197 = pneg %p196
      // Predicated region
      $region33: #{tpu_custom_call.1} parent=5 // pred_check
        _
      $region34: #{tpu_custom_call.1} parent=5 // pred_check_branch
        %199 = sbr.rel (%p196) target = $region36
      $region35: #{tpu_custom_call.1} parent=5 // pred_region
        %s200 = ssub.s32 %s21, 1
        // Predicated region
        $region37: #{tpu_custom_call.1} parent=35 // pred_check
          %p201 = pneg %p54
        $region38: #{tpu_custom_call.1} parent=35 // pred_check_branch
          %203 = sbr.rel (%p201) target = $region40
        $region39: #{tpu_custom_call.1} parent=35 // pred_region
          %204 = dma.done [#allocation8], 10240
        $region40: #{tpu_custom_call.1} parent=35 // pred_fallthru
          _
        // Predicated region
        $region41: #{tpu_custom_call.1} parent=35 // pred_check
          %p205 = pneg %p96
        $region42: #{tpu_custom_call.1} parent=35 // pred_check_branch
          %207 = sbr.rel (%p205) target = $region44
        $region43: #{tpu_custom_call.1} parent=35 // pred_region
          %208 = dma.done [#allocation11], 2048
        $region44: #{tpu_custom_call.1} parent=35 // pred_fallthru
          _
        %p209 = pneg %p54
        %p210 = pneg %p51
        %p211 = pneg %p75
        %p212 = pneg %p72
        %p213 = pneg %p96
        %p214 = pneg %p93
        %p215 = pneg %p117
        %p216 = pneg %p114
        %p217 = pneg %p143
        %p218 = pneg %p140
        %s219 = sand.u32 %s130, 1
        %s220 = scalar_lea.sflag [#allocation9], %s219
        %s221 = sand.u32 %s130, 1
        %s222 = scalar_lea.vmem [#allocation12], %s221
        %p223 = scmp.eq.s32.totalorder %s31, 0
        // Predicated region
        $region45: #{tpu_custom_call.1} parent=35 // pred_check
          %p224 = pneg %p223
        $region46: #{tpu_custom_call.1} parent=35 // pred_check_branch
          %226 = sbr.rel (%p224) target = $region48
        $region47: #{tpu_custom_call.1} parent=35 // pred_region
          %227 = vst [vmem:[#allocation3] sm:$0x1] 0.0
        $region48: #{tpu_custom_call.1} parent=35 // pred_fallthru
          _
        loop: start=0, step=1, limit=12
        $region49: #{tpu_custom_call.1} parent=35 // loop_pre_header
          _
        $region50: #{tpu_custom_call.1} parent=35 // loop_header
          %s229 = sphi 0, %s233
          %p230 = scmp.ge.s32.totalorder %s229, 12
        $region51: #{tpu_custom_call.1} parent=35 // loop_header_branch
          %232 = sbr.rel (%p230) target = $region55
        $region52: #{tpu_custom_call.1} parent=35 // loop_body
          %s234 = smul.u32 %s31, 8
          %s235 = sadd.s32 %s234, %s229
          %s236 = ssub.s32 %s235, 2
          %p237 = scmp.gt.s32.totalorder %s236, 0
          %s238 = scalar_select %p237, %s236, 0
          %p239 = scmp.lt.s32.totalorder %s238, 15
          %s240 = scalar_select %p239, %s238, 15
          %s241 = sshra.s32 %s240, 7
          %s242 = sand.u32 %s240, 127
          %s243 = sadd.s32 %s241, %s30
          %s244 = smul.u32 %s243, 128
          %s245 = sshra.s32 %s240, 7
          %s246 = sand.u32 %s240, 127
          %s247 = sadd.s32 %s244, %s246
          %s248 = sld [smem:[#allocation6 + %s247]]
          %p249 = scmp.gt.s32.totalorder %s248, 0
          %s250 = scalar_select %p249, %s248, 0
          %p251 = scmp.lt.s32.totalorder %s250, 50
          %s252 = scalar_select %p251, %s250, 50
          %s253 = smul.addr %s252, 16
          %s254 = scalar_lea.hbm %s1, %s253
          %s255 = scalar_lea.vmem [#allocation2], %s229
          // Predicated region
          $region56: #{tpu_custom_call.1} parent=52 // pred_check
            _
          $region57: #{tpu_custom_call.1} parent=52 // pred_check_branch
            %257 = sbr.rel target = $region59
          $region58: #{tpu_custom_call.1} parent=52 // pred_region
            %258 = sst [smem:[#allocation15]] [#allocation14]
            %259 = sst [smem:[#allocation16]] [#allocation13]
          $region59: #{tpu_custom_call.1} parent=52 // pred_fallthru
            _
          %261 = shalt.err (0)
          %s263 = sshll.u32 %s255, 4
          %s264 = int_to_ptr.vmem [resolvable:$true] %s263
          %266 = dma.hbm_to_vmem [thread:$0]  %s254, 16, %s264, [#allocation4]
        $region53: #{tpu_custom_call.1} parent=35 // loop_footer
          %s233 = sadd.s32 1, %s229
        $region54: #{tpu_custom_call.1} parent=35 // loop_footer_branch
          %228 = sbr.rel target = $region50
        $region55: #{tpu_custom_call.1} parent=35 // loop_exit
          _
        loop: start=0, step=1, limit=12
        $region60: #{tpu_custom_call.1} parent=35 // loop_pre_header
          _
        $region61: #{tpu_custom_call.1} parent=35 // loop_header
          %s268 = sphi 0, %s272
          %p269 = scmp.ge.s32.totalorder %s268, 12
        $region62: #{tpu_custom_call.1} parent=35 // loop_header_branch
          %271 = sbr.rel (%p269) target = $region66
        $region63: #{tpu_custom_call.1} parent=35 // loop_body
          %s273 = smul.u32 %s31, 8
          %s274 = sadd.s32 %s273, %s268
          %s275 = ssub.s32 %s274, 2
          %p276 = scmp.gt.s32.totalorder %s275, 0
          %s277 = scalar_select %p276, %s275, 0
          %p278 = scmp.lt.s32.totalorder %s277, 15
          %s279 = scalar_select %p278, %s277, 15
          %s280 = sshra.s32 %s279, 7
          %s281 = sand.u32 %s279, 127
          %s282 = sadd.s32 %s280, %s30
          %s283 = smul.u32 %s282, 128
          %s284 = sshra.s32 %s279, 7
          %s285 = sand.u32 %s279, 127
          %s286 = sadd.s32 %s283, %s285
          %s287 = sld [smem:[#allocation6 + %s286]]
          %s288 = smul.u32 1, 1
          %s289 = sshll.u32 %s288, 4
          %290 = dma.done [#allocation4], %s289
        $region64: #{tpu_custom_call.1} parent=35 // loop_footer
          %s272 = sadd.s32 1, %s268
        $region65: #{tpu_custom_call.1} parent=35 // loop_footer_branch
          %267 = sbr.rel target = $region61
        $region66: #{tpu_custom_call.1} parent=35 // loop_exit
          _
        %s291 = smul.u32 %s31, 8
        %v292 = vlaneseq
        %v293 = vshrl.u32 %v292, 7
        %v294 = vadd.s32 %v293, 8
        %v295 = vstv %s291
        %v296 = vadd.s32 %v295, %v293
        %v297 = vadd.s32 %v295, %v294
        %v298 = vsub.s32 %v296, 2
        %v299 = vsub.s32 %v297, 2
        %v300 = vld [vmem:[#allocation2] sm:$0xff]
        %v301 = vld [vmem:[#allocation2 + $0x8] sm:$0xf]
        %vm302 = vcmp.ge.s32.totalorder %v298, 0
        %vm303 = vcmp.ge.s32.totalorder %v299, 0
        %vm304 = vcmp.lt.s32.totalorder %v298, 16
        %vm305 = vcmp.lt.s32.totalorder %v299, 16
        %vm306 = vmand %vm302, %vm304
        %vm307 = vmand %vm303, %vm305
        %v308 = vsel %vm306, %v300, 0.0
        %v309 = vsel %vm307, %v301, 0.0
        %v310 = vld [vmem:[#allocation7] sm:$0xff]
        %v311 = vld [vmem:[#allocation7 + $0x8] sm:$0xff]
        %v312 = vld [vmem:[#allocation7 + $0x10] sm:$0xff]
        %v313 = vld [vmem:[#allocation7 + $0x18] sm:$0xff]
        %v314 = vld [vmem:[#allocation7 + $0x20] sm:$0xff]
        %v315 = vld [vmem:[#allocation7 + $0x28] sm:$0xff]
        %v316 = vld [vmem:[#allocation7 + $0x30] sm:$0xff]
        %v317 = vld [vmem:[#allocation7 + $0x38] sm:$0xff]
        %v318 = vld [vmem:[#allocation7 + $0x40] sm:$0xff]
        %v319 = vld [vmem:[#allocation7 + $0x48] sm:$0xff]
        %v320 = vld [vmem:[#allocation7 + $0x50] sm:$0xff]
        %v321 = vld [vmem:[#allocation7 + $0x58] sm:$0xff]
        %v322 = vld [vmem:[#allocation7 + $0x60] sm:$0xff]
        %v323 = vld [vmem:[#allocation7 + $0x68] sm:$0xff]
        %v324 = vld [vmem:[#allocation7 + $0x70] sm:$0xff]
        %v325 = vld [vmem:[#allocation7 + $0x78] sm:$0xff]
        %v326 = vld [vmem:[#allocation7 + $0x80] sm:$0xff]
        %v327 = vld [vmem:[#allocation7 + $0x88] sm:$0xff]
        %v328 = vld [vmem:[#allocation7 + $0x90] sm:$0xff]
        %v329 = vld [vmem:[#allocation7 + $0x98] sm:$0xff]
        %v330 = vld [vmem:[#allocation7 + $0xa0] sm:$0xff]
        %v331 = vld [vmem:[#allocation7 + $0xa8] sm:$0xff]
        %v332 = vld [vmem:[#allocation7 + $0xb0] sm:$0xff]
        %v333 = vld [vmem:[#allocation7 + $0xb8] sm:$0xff]
        %v334 = vld [vmem:[#allocation7 + $0xc0] sm:$0xff]
        %v335 = vld [vmem:[#allocation7 + $0xc8] sm:$0xff]
        %v336 = vld [vmem:[#allocation7 + $0xd0] sm:$0xff]
        %v337 = vld [vmem:[#allocation7 + $0xd8] sm:$0xff]
        %v338 = vld [vmem:[#allocation7 + $0xe0] sm:$0xff]
        %v339 = vld [vmem:[#allocation7 + $0xe8] sm:$0xff]
        %v340 = vld [vmem:[#allocation7 + $0xf0] sm:$0xff]
        %v341 = vld [vmem:[#allocation7 + $0xf8] sm:$0xff]
        %vm344 = vcmask 1046528
        %v345 = vrot.slane %v308, 1
        %v346 = vrot.slane %v309, 1
        %v347 = vsel %vm344, %v345, %v346
        %349 = vmatprep.subr.mxu0 0.0
        %350 = vmatpush1.msra.mxu0 %v326
        %351 = vmatprep.subr.mxu0 0.0
        %352 = vmatpush1.msra.mxu0 %v327
        %353 = vmatprep.subr.mxu0 0.0
        %354 = vmatpush1.msra.mxu0 %v328
        %355 = vmatprep.subr.mxu0 0.0
        %356 = vmatpush1.msra.mxu0 %v329
        %357 = vmatprep.subr.mxu0 0.0
        %358 = vmatpush1.msra.mxu0 %v330
        %359 = vmatprep.subr.mxu0 0.0
        %360 = vmatpush1.msra.mxu0 %v331
        %361 = vmatprep.subr.mxu0 0.0
        %362 = vmatpush1.msra.mxu0 %v332
        %363 = vmatprep.subr.mxu0 0.0
        %364 = vmatpush1.msra.mxu0 %v333
        %365 = vmatprep.subr.mxu0 0.0
        %366 = vmatpush1.msra.mxu0 %v334
        %367 = vmatprep.subr.mxu0 0.0
        %368 = vmatpush1.msra.mxu0 %v335
        %369 = vmatprep.subr.mxu0 0.0
        %370 = vmatpush1.msra.mxu0 %v336
        %371 = vmatprep.subr.mxu0 0.0
        %372 = vmatpush1.msra.mxu0 %v337
        %373 = vmatprep.subr.mxu0 0.0
        %374 = vmatpush1.msra.mxu0 %v338
        %375 = vmatprep.subr.mxu0 0.0
        %376 = vmatpush1.msra.mxu0 %v339
        %377 = vmatprep.subr.mxu0 0.0
        %378 = vmatpush1.msra.mxu0 %v340
        %379 = vmatprep.subr.mxu0 0.0
        %380 = vmatpush1.msra.mxu0 %v341
        %381 = vmatprep.subr.mxu0 0.0
        %382 = vmatpush1.msra.mxu0 0.0
        %383 = vmatprep.subr.mxu0 0.0
        %384 = vmatpush1.msra.mxu0 0.0
        %385 = vmatprep.subr.mxu0 0.0
        %386 = vmatpush1.msra.mxu0 0.0
        %387 = vmatprep.subr.mxu0 0.0
        %388 = vmatpush1.msra.mxu0 0.0
        %389 = vmatprep.subr.mxu0 0.0
        %390 = vmatpush1.msra.mxu0 0.0
        %391 = vmatprep.subr.mxu0 0.0
        %392 = vmatpush1.msra.mxu0 0.0
        %393 = vmatprep.subr.mxu0 0.0
        %394 = vmatpush1.msra.mxu0 0.0
        %395 = vmatprep.subr.mxu0 0.0
        %396 = vmatpush1.msra.mxu0 0.0
        %397 = vmatprep.subr.mxu0 0.0
        %398 = vmatpush1.msra.mxu0 0.0
        %399 = vmatprep.subr.mxu0 0.0
        %400 = vmatpush1.msra.mxu0 0.0
        %401 = vmatprep.subr.mxu0 0.0
        %402 = vmatpush1.msra.mxu0 0.0
        %403 = vmatprep.subr.mxu0 0.0
        %404 = vmatpush1.msra.mxu0 0.0
        %405 = vmatprep.subr.mxu0 0.0
        %406 = vmatpush1.msra.mxu0 0.0
        %407 = vmatprep.subr.mxu0 0.0
        %408 = vmatpush1.msra.mxu0 0.0
        %409 = vmatprep.subr.mxu0 0.0
        %410 = vmatpush1.msra.mxu0 0.0
        %411 = vmatprep.subr.mxu0 0.0
        %412 = vmatpush1.msra.mxu0 0.0
        %413 = vmatprep.mubr.f32.mxu0 0.0
        %414 = vmatmul.mubr.f32.gmra.mrb[0].mxu0 %v347
        %v415 = vpop.f32.mrb[0].mxu0
        %v416 = vadd.f32 0.0, %v415
        %v417 = vpop.f32.mrb[0].mxu0
        %418 = vdwg.mxu0
        %419 = vmatprep.subr.mxu0 0.0
        %420 = vmatpush1.msra.mxu0 %v310
        %421 = vmatprep.subr.mxu0 0.0
        %422 = vmatpush1.msra.mxu0 %v311
        %423 = vmatprep.subr.mxu0 0.0
        %424 = vmatpush1.msra.mxu0 %v312
        %425 = vmatprep.subr.mxu0 0.0
        %426 = vmatpush1.msra.mxu0 %v313
        %427 = vmatprep.subr.mxu0 0.0
        %428 = vmatpush1.msra.mxu0 %v314
        %429 = vmatprep.subr.mxu0 0.0
        %430 = vmatpush1.msra.mxu0 %v315
        %431 = vmatprep.subr.mxu0 0.0
        %432 = vmatpush1.msra.mxu0 %v316
        %433 = vmatprep.subr.mxu0 0.0
        %434 = vmatpush1.msra.mxu0 %v317
        %435 = vmatprep.subr.mxu0 0.0
        %436 = vmatpush1.msra.mxu0 %v318
        %437 = vmatprep.subr.mxu0 0.0
        %438 = vmatpush1.msra.mxu0 %v319
        %439 = vmatprep.subr.mxu0 0.0
        %440 = vmatpush1.msra.mxu0 %v320
        %441 = vmatprep.subr.mxu0 0.0
        %442 = vmatpush1.msra.mxu0 %v321
        %443 = vmatprep.subr.mxu0 0.0
        %444 = vmatpush1.msra.mxu0 %v322
        %445 = vmatprep.subr.mxu0 0.0
        %446 = vmatpush1.msra.mxu0 %v323
        %447 = vmatprep.subr.mxu0 0.0
        %448 = vmatpush1.msra.mxu0 %v324
        %449 = vmatprep.subr.mxu0 0.0
        %450 = vmatpush1.msra.mxu0 %v325
        %451 = vmatprep.subr.mxu0 0.0
        %452 = vmatpush1.msra.mxu0 0.0
        %453 = vmatprep.subr.mxu0 0.0
        %454 = vmatpush1.msra.mxu0 0.0
        %455 = vmatprep.subr.mxu0 0.0
        %456 = vmatpush1.msra.mxu0 0.0
        %457 = vmatprep.subr.mxu0 0.0
        %458 = vmatpush1.msra.mxu0 0.0
        %459 = vmatprep.subr.mxu0 0.0
        %460 = vmatpush1.msra.mxu0 0.0
        %461 = vmatprep.subr.mxu0 0.0
        %462 = vmatpush1.msra.mxu0 0.0
        %463 = vmatprep.subr.mxu0 0.0
        %464 = vmatpush1.msra.mxu0 0.0
        %465 = vmatprep.subr.mxu0 0.0
        %466 = vmatpush1.msra.mxu0 0.0
        %467 = vmatprep.subr.mxu0 0.0
        %468 = vmatpush1.msra.mxu0 0.0
        %469 = vmatprep.subr.mxu0 0.0
        %470 = vmatpush1.msra.mxu0 0.0
        %471 = vmatprep.subr.mxu0 0.0
        %472 = vmatpush1.msra.mxu0 0.0
        %473 = vmatprep.subr.mxu0 0.0
        %474 = vmatpush1.msra.mxu0 0.0
        %475 = vmatprep.subr.mxu0 0.0
        %476 = vmatpush1.msra.mxu0 0.0
        %477 = vmatprep.subr.mxu0 0.0
        %478 = vmatpush1.msra.mxu0 0.0
        %479 = vmatprep.subr.mxu0 0.0
        %480 = vmatpush1.msra.mxu0 0.0
        %481 = vmatprep.subr.mxu0 0.0
        %482 = vmatpush1.msra.mxu0 0.0
        %483 = vmatprep.mubr.f32.mxu0 0.0
        %484 = vmatmul.mubr.f32.gmra.mrb[0].mxu0 %v308
        %v485 = vpop.f32.mrb[0].mxu0
        %v486 = vadd.f32 %v416, %v485
        %v487 = vpop.f32.mrb[0].mxu0
        %488 = vdwg.mxu0
        %v489 = vld [vmem:[#allocation7 + $0x100] sm:$0xff]
        %v490 = vld [vmem:[#allocation7 + $0x108] sm:$0xff]
        %v491 = vld [vmem:[#allocation7 + $0x110] sm:$0xff]
        %v492 = vld [vmem:[#allocation7 + $0x118] sm:$0xff]
        %v493 = vld [vmem:[#allocation7 + $0x120] sm:$0xff]
        %v494 = vld [vmem:[#allocation7 + $0x128] sm:$0xff]
        %v495 = vld [vmem:[#allocation7 + $0x130] sm:$0xff]
        %v496 = vld [vmem:[#allocation7 + $0x138] sm:$0xff]
        %v497 = vld [vmem:[#allocation7 + $0x140] sm:$0xff]
        %v498 = vld [vmem:[#allocation7 + $0x148] sm:$0xff]
        %v499 = vld [vmem:[#allocation7 + $0x150] sm:$0xff]
        %v500 = vld [vmem:[#allocation7 + $0x158] sm:$0xff]
        %v501 = vld [vmem:[#allocation7 + $0x160] sm:$0xff]
        %v502 = vld [vmem:[#allocation7 + $0x168] sm:$0xff]
        %v503 = vld [vmem:[#allocation7 + $0x170] sm:$0xff]
        %v504 = vld [vmem:[#allocation7 + $0x178] sm:$0xff]
        %vm505 = vcmask 1045504
        %v506 = vrot.slane %v308, 2
        %v507 = vrot.slane %v309, 2
        %v508 = vsel %vm505, %v506, %v507
        %510 = vmatprep.subr.mxu0 0.0
        %511 = vmatpush1.msra.mxu0 %v489
        %512 = vmatprep.subr.mxu0 0.0
        %513 = vmatpush1.msra.mxu0 %v490
        %514 = vmatprep.subr.mxu0 0.0
        %515 = vmatpush1.msra.mxu0 %v491
        %516 = vmatprep.subr.mxu0 0.0
        %517 = vmatpush1.msra.mxu0 %v492
        %518 = vmatprep.subr.mxu0 0.0
        %519 = vmatpush1.msra.mxu0 %v493
        %520 = vmatprep.subr.mxu0 0.0
        %521 = vmatpush1.msra.mxu0 %v494
        %522 = vmatprep.subr.mxu0 0.0
        %523 = vmatpush1.msra.mxu0 %v495
        %524 = vmatprep.subr.mxu0 0.0
        %525 = vmatpush1.msra.mxu0 %v496
        %526 = vmatprep.subr.mxu0 0.0
        %527 = vmatpush1.msra.mxu0 %v497
        %528 = vmatprep.subr.mxu0 0.0
        %529 = vmatpush1.msra.mxu0 %v498
        %530 = vmatprep.subr.mxu0 0.0
        %531 = vmatpush1.msra.mxu0 %v499
        %532 = vmatprep.subr.mxu0 0.0
        %533 = vmatpush1.msra.mxu0 %v500
        %534 = vmatprep.subr.mxu0 0.0
        %535 = vmatpush1.msra.mxu0 %v501
        %536 = vmatprep.subr.mxu0 0.0
        %537 = vmatpush1.msra.mxu0 %v502
        %538 = vmatprep.subr.mxu0 0.0
        %539 = vmatpush1.msra.mxu0 %v503
        %540 = vmatprep.subr.mxu0 0.0
        %541 = vmatpush1.msra.mxu0 %v504
        %542 = vmatprep.subr.mxu0 0.0
        %543 = vmatpush1.msra.mxu0 0.0
        %544 = vmatprep.subr.mxu0 0.0
        %545 = vmatpush1.msra.mxu0 0.0
        %546 = vmatprep.subr.mxu0 0.0
        %547 = vmatpush1.msra.mxu0 0.0
        %548 = vmatprep.subr.mxu0 0.0
        %549 = vmatpush1.msra.mxu0 0.0
        %550 = vmatprep.subr.mxu0 0.0
        %551 = vmatpush1.msra.mxu0 0.0
        %552 = vmatprep.subr.mxu0 0.0
        %553 = vmatpush1.msra.mxu0 0.0
        %554 = vmatprep.subr.mxu0 0.0
        %555 = vmatpush1.msra.mxu0 0.0
        %556 = vmatprep.subr.mxu0 0.0
        %557 = vmatpush1.msra.mxu0 0.0
        %558 = vmatprep.subr.mxu0 0.0
        %559 = vmatpush1.msra.mxu0 0.0
        %560 = vmatprep.subr.mxu0 0.0
        %561 = vmatpush1.msra.mxu0 0.0
        %562 = vmatprep.subr.mxu0 0.0
        %563 = vmatpush1.msra.mxu0 0.0
        %564 = vmatprep.subr.mxu0 0.0
        %565 = vmatpush1.msra.mxu0 0.0
        %566 = vmatprep.subr.mxu0 0.0
        %567 = vmatpush1.msra.mxu0 0.0
        %568 = vmatprep.subr.mxu0 0.0
        %569 = vmatpush1.msra.mxu0 0.0
        %570 = vmatprep.subr.mxu0 0.0
        %571 = vmatpush1.msra.mxu0 0.0
        %572 = vmatprep.subr.mxu0 0.0
        %573 = vmatpush1.msra.mxu0 0.0
        %574 = vmatprep.mubr.f32.mxu0 0.0
        %575 = vmatmul.mubr.f32.gmra.mrb[0].mxu0 %v508
        %v576 = vpop.f32.mrb[0].mxu0
        %v577 = vadd.f32 0.0, %v576
        %v578 = vpop.f32.mrb[0].mxu0
        %579 = vdwg.mxu0
        %v580 = vadd.f32 %v486, %v577
        %v581 = vld [vmem:[#allocation7 + $0x180] sm:$0xff]
        %v582 = vld [vmem:[#allocation7 + $0x188] sm:$0xff]
        %v583 = vld [vmem:[#allocation7 + $0x190] sm:$0xff]
        %v584 = vld [vmem:[#allocation7 + $0x198] sm:$0xff]
        %v585 = vld [vmem:[#allocation7 + $0x1a0] sm:$0xff]
        %v586 = vld [vmem:[#allocation7 + $0x1a8] sm:$0xff]
        %v587 = vld [vmem:[#allocation7 + $0x1b0] sm:$0xff]
        %v588 = vld [vmem:[#allocation7 + $0x1b8] sm:$0xff]
        %v589 = vld [vmem:[#allocation7 + $0x1c0] sm:$0xff]
        %v590 = vld [vmem:[#allocation7 + $0x1c8] sm:$0xff]
        %v591 = vld [vmem:[#allocation7 + $0x1d0] sm:$0xff]
        %v592 = vld [vmem:[#allocation7 + $0x1d8] sm:$0xff]
        %v593 = vld [vmem:[#allocation7 + $0x1e0] sm:$0xff]
        %v594 = vld [vmem:[#allocation7 + $0x1e8] sm:$0xff]
        %v595 = vld [vmem:[#allocation7 + $0x1f0] sm:$0xff]
        %v596 = vld [vmem:[#allocation7 + $0x1f8] sm:$0xff]
        %vm597 = vcmask 1044480
        %v598 = vrot.slane %v308, 3
        %v599 = vrot.slane %v309, 3
        %v600 = vsel %vm597, %v598, %v599
        %602 = vmatprep.subr.mxu0 0.0
        %603 = vmatpush1.msra.mxu0 %v581
        %604 = vmatprep.subr.mxu0 0.0
        %605 = vmatpush1.msra.mxu0 %v582
        %606 = vmatprep.subr.mxu0 0.0
        %607 = vmatpush1.msra.mxu0 %v583
        %608 = vmatprep.subr.mxu0 0.0
        %609 = vmatpush1.msra.mxu0 %v584
        %610 = vmatprep.subr.mxu0 0.0
        %611 = vmatpush1.msra.mxu0 %v585
        %612 = vmatprep.subr.mxu0 0.0
        %613 = vmatpush1.msra.mxu0 %v586
        %614 = vmatprep.subr.mxu0 0.0
        %615 = vmatpush1.msra.mxu0 %v587
        %616 = vmatprep.subr.mxu0 0.0
        %617 = vmatpush1.msra.mxu0 %v588
        %618 = vmatprep.subr.mxu0 0.0
        %619 = vmatpush1.msra.mxu0 %v589
        %620 = vmatprep.subr.mxu0 0.0
        %621 = vmatpush1.msra.mxu0 %v590
        %622 = vmatprep.subr.mxu0 0.0
        %623 = vmatpush1.msra.mxu0 %v591
        %624 = vmatprep.subr.mxu0 0.0
        %625 = vmatpush1.msra.mxu0 %v592
        %626 = vmatprep.subr.mxu0 0.0
        %627 = vmatpush1.msra.mxu0 %v593
        %628 = vmatprep.subr.mxu0 0.0
        %629 = vmatpush1.msra.mxu0 %v594
        %630 = vmatprep.subr.mxu0 0.0
        %631 = vmatpush1.msra.mxu0 %v595
        %632 = vmatprep.subr.mxu0 0.0
        %633 = vmatpush1.msra.mxu0 %v596
        %634 = vmatprep.subr.mxu0 0.0
        %635 = vmatpush1.msra.mxu0 0.0
        %636 = vmatprep.subr.mxu0 0.0
        %637 = vmatpush1.msra.mxu0 0.0
        %638 = vmatprep.subr.mxu0 0.0
        %639 = vmatpush1.msra.mxu0 0.0
        %640 = vmatprep.subr.mxu0 0.0
        %641 = vmatpush1.msra.mxu0 0.0
        %642 = vmatprep.subr.mxu0 0.0
        %643 = vmatpush1.msra.mxu0 0.0
        %644 = vmatprep.subr.mxu0 0.0
        %645 = vmatpush1.msra.mxu0 0.0
        %646 = vmatprep.subr.mxu0 0.0
        %647 = vmatpush1.msra.mxu0 0.0
        %648 = vmatprep.subr.mxu0 0.0
        %649 = vmatpush1.msra.mxu0 0.0
        %650 = vmatprep.subr.mxu0 0.0
        %651 = vmatpush1.msra.mxu0 0.0
        %652 = vmatprep.subr.mxu0 0.0
        %653 = vmatpush1.msra.mxu0 0.0
        %654 = vmatprep.subr.mxu0 0.0
        %655 = vmatpush1.msra.mxu0 0.0
        %656 = vmatprep.subr.mxu0 0.0
        %657 = vmatpush1.msra.mxu0 0.0
        %658 = vmatprep.subr.mxu0 0.0
        %659 = vmatpush1.msra.mxu0 0.0
        %660 = vmatprep.subr.mxu0 0.0
        %661 = vmatpush1.msra.mxu0 0.0
        %662 = vmatprep.subr.mxu0 0.0
        %663 = vmatpush1.msra.mxu0 0.0
        %664 = vmatprep.subr.mxu0 0.0
        %665 = vmatpush1.msra.mxu0 0.0
        %666 = vmatprep.mubr.f32.mxu0 0.0
        %667 = vmatmul.mubr.f32.gmra.mrb[0].mxu0 %v600
        %v668 = vpop.f32.mrb[0].mxu0
        %v669 = vadd.f32 0.0, %v668
        %v670 = vpop.f32.mrb[0].mxu0
        %671 = vdwg.mxu0
        %v672 = vadd.f32 %v580, %v669
        %v673 = vld [vmem:[#allocation7 + $0x200] sm:$0xff]
        %v674 = vld [vmem:[#allocation7 + $0x208] sm:$0xff]
        %v675 = vld [vmem:[#allocation7 + $0x210] sm:$0xff]
        %v676 = vld [vmem:[#allocation7 + $0x218] sm:$0xff]
        %v677 = vld [vmem:[#allocation7 + $0x220] sm:$0xff]
        %v678 = vld [vmem:[#allocation7 + $0x228] sm:$0xff]
        %v679 = vld [vmem:[#allocation7 + $0x230] sm:$0xff]
        %v680 = vld [vmem:[#allocation7 + $0x238] sm:$0xff]
        %v681 = vld [vmem:[#allocation7 + $0x240] sm:$0xff]
        %v682 = vld [vmem:[#allocation7 + $0x248] sm:$0xff]
        %v683 = vld [vmem:[#allocation7 + $0x250] sm:$0xff]
        %v684 = vld [vmem:[#allocation7 + $0x258] sm:$0xff]
        %v685 = vld [vmem:[#allocation7 + $0x260] sm:$0xff]
        %v686 = vld [vmem:[#allocation7 + $0x268] sm:$0xff]
        %v687 = vld [vmem:[#allocation7 + $0x270] sm:$0xff]
        %v688 = vld [vmem:[#allocation7 + $0x278] sm:$0xff]
        %vm689 = vcmask 1043456
        %v690 = vrot.slane %v308, 4
        %v691 = vrot.slane %v309, 4
        %v692 = vsel %vm689, %v690, %v691
        %694 = vmatprep.subr.mxu0 0.0
        %695 = vmatpush1.msra.mxu0 %v673
        %696 = vmatprep.subr.mxu0 0.0
        %697 = vmatpush1.msra.mxu0 %v674
        %698 = vmatprep.subr.mxu0 0.0
        %699 = vmatpush1.msra.mxu0 %v675
        %700 = vmatprep.subr.mxu0 0.0
        %701 = vmatpush1.msra.mxu0 %v676
        %702 = vmatprep.subr.mxu0 0.0
        %703 = vmatpush1.msra.mxu0 %v677
        %704 = vmatprep.subr.mxu0 0.0
        %705 = vmatpush1.msra.mxu0 %v678
        %706 = vmatprep.subr.mxu0 0.0
        %707 = vmatpush1.msra.mxu0 %v679
        %708 = vmatprep.subr.mxu0 0.0
        %709 = vmatpush1.msra.mxu0 %v680
        %710 = vmatprep.subr.mxu0 0.0
        %711 = vmatpush1.msra.mxu0 %v681
        %712 = vmatprep.subr.mxu0 0.0
        %713 = vmatpush1.msra.mxu0 %v682
        %714 = vmatprep.subr.mxu0 0.0
        %715 = vmatpush1.msra.mxu0 %v683
        %716 = vmatprep.subr.mxu0 0.0
        %717 = vmatpush1.msra.mxu0 %v684
        %718 = vmatprep.subr.mxu0 0.0
        %719 = vmatpush1.msra.mxu0 %v685
        %720 = vmatprep.subr.mxu0 0.0
        %721 = vmatpush1.msra.mxu0 %v686
        %722 = vmatprep.subr.mxu0 0.0
        %723 = vmatpush1.msra.mxu0 %v687
        %724 = vmatprep.subr.mxu0 0.0
        %725 = vmatpush1.msra.mxu0 %v688
        %726 = vmatprep.subr.mxu0 0.0
        %727 = vmatpush1.msra.mxu0 0.0
        %728 = vmatprep.subr.mxu0 0.0
        %729 = vmatpush1.msra.mxu0 0.0
        %730 = vmatprep.subr.mxu0 0.0
        %731 = vmatpush1.msra.mxu0 0.0
        %732 = vmatprep.subr.mxu0 0.0
        %733 = vmatpush1.msra.mxu0 0.0
        %734 = vmatprep.subr.mxu0 0.0
        %735 = vmatpush1.msra.mxu0 0.0
        %736 = vmatprep.subr.mxu0 0.0
        %737 = vmatpush1.msra.mxu0 0.0
        %738 = vmatprep.subr.mxu0 0.0
        %739 = vmatpush1.msra.mxu0 0.0
        %740 = vmatprep.subr.mxu0 0.0
        %741 = vmatpush1.msra.mxu0 0.0
        %742 = vmatprep.subr.mxu0 0.0
        %743 = vmatpush1.msra.mxu0 0.0
        %744 = vmatprep.subr.mxu0 0.0
        %745 = vmatpush1.msra.mxu0 0.0
        %746 = vmatprep.subr.mxu0 0.0
        %747 = vmatpush1.msra.mxu0 0.0
        %748 = vmatprep.subr.mxu0 0.0
        %749 = vmatpush1.msra.mxu0 0.0
        %750 = vmatprep.subr.mxu0 0.0
        %751 = vmatpush1.msra.mxu0 0.0
        %752 = vmatprep.subr.mxu0 0.0
        %753 = vmatpush1.msra.mxu0 0.0
        %754 = vmatprep.subr.mxu0 0.0
        %755 = vmatpush1.msra.mxu0 0.0
        %756 = vmatprep.subr.mxu0 0.0
        %757 = vmatpush1.msra.mxu0 0.0
        %758 = vmatprep.mubr.f32.mxu0 0.0
        %759 = vmatmul.mubr.f32.gmra.mrb[0].mxu0 %v692
        %v760 = vpop.f32.mrb[0].mxu0
        %v761 = vadd.f32 0.0, %v760
        %v762 = vpop.f32.mrb[0].mxu0
        %763 = vdwg.mxu0
        %v764 = vadd.f32 %v672, %v761
        %v765 = vld [vmem:[%s3] sm:$0x1]
        %v767 = vlaneseq
        %v768 = vshrl.u32 %v767, 7
        %v769 = vsub.s32 0, %v768
        %v770 = vrot.slane %v765, %v769
        %v772 = vadd.f32 %v764, %v770
        %v773 = vmax.f32 %v772, 0.0
        %v774 = vrot.slane %v773, 4
        %v775 = vmax.f32 %v773, %v774
        %v776 = vrot.slane %v775, 2
        %v777 = vmax.f32 %v775, %v776
        %v778 = vrot.slane %v777, 1
        %v779 = vmax.f32 %v777, %v778
        %v780 = vld [vmem:[#allocation3] sm:$0x1]
        %v781 = vmax.f32 %v780, %v779
        %782 = vst [vmem:[#allocation3] sm:$0x1] %v781
        %p783 = scmp.eq.s32.totalorder %s31, 1
        // Predicated region
        $region67: #{tpu_custom_call.1} parent=35 // pred_check
          %p784 = pneg %p783
        $region68: #{tpu_custom_call.1} parent=35 // pred_check_branch
          %786 = sbr.rel (%p784) target = $region70
        $region69: #{tpu_custom_call.1} parent=35 // pred_region
          %v787 = vld [vmem:[#allocation3] sm:$0x1]
          %v788 = vld [vmem:[#allocation10] sm:$0xff]
          %v789 = vld [vmem:[#allocation10 + $0x8] sm:$0xff]
          %v790 = vld [vmem:[#allocation10 + $0x10] sm:$0xff]
          %v791 = vld [vmem:[#allocation10 + $0x18] sm:$0xff]
          %v792 = vld [vmem:[#allocation10 + $0x20] sm:$0xff]
          %v793 = vld [vmem:[#allocation10 + $0x28] sm:$0xff]
          %v794 = vld [vmem:[#allocation10 + $0x30] sm:$0xff]
          %v795 = vld [vmem:[#allocation10 + $0x38] sm:$0xff]
          %v796 = vld [vmem:[#allocation10 + $0x40] sm:$0xff]
          %v797 = vld [vmem:[#allocation10 + $0x48] sm:$0xff]
          %v798 = vld [vmem:[#allocation10 + $0x50] sm:$0xff]
          %v799 = vld [vmem:[#allocation10 + $0x58] sm:$0xff]
          %v800 = vld [vmem:[#allocation10 + $0x60] sm:$0xff]
          %v801 = vld [vmem:[#allocation10 + $0x68] sm:$0xff]
          %v802 = vld [vmem:[#allocation10 + $0x70] sm:$0xff]
          %v803 = vld [vmem:[#allocation10 + $0x78] sm:$0xff]
          %v804 = vld [vmem:[%s5] sm:$0x1]
          %805 = vmatprep.subr.mxu0 0.0
          %806 = vmatpush1.msra.mxu0 %v788
          %807 = vmatprep.subr.mxu0 0.0
          %808 = vmatpush1.msra.mxu0 %v789
          %809 = vmatprep.subr.mxu0 0.0
          %810 = vmatpush1.msra.mxu0 %v790
          %811 = vmatprep.subr.mxu0 0.0
          %812 = vmatpush1.msra.mxu0 %v791
          %813 = vmatprep.subr.mxu0 0.0
          %814 = vmatpush1.msra.mxu0 %v792
          %815 = vmatprep.subr.mxu0 0.0
          %816 = vmatpush1.msra.mxu0 %v793
          %817 = vmatprep.subr.mxu0 0.0
          %818 = vmatpush1.msra.mxu0 %v794
          %819 = vmatprep.subr.mxu0 0.0
          %820 = vmatpush1.msra.mxu0 %v795
          %821 = vmatprep.subr.mxu0 0.0
          %822 = vmatpush1.msra.mxu0 %v796
          %823 = vmatprep.subr.mxu0 0.0
          %824 = vmatpush1.msra.mxu0 %v797
          %825 = vmatprep.subr.mxu0 0.0
          %826 = vmatpush1.msra.mxu0 %v798
          %827 = vmatprep.subr.mxu0 0.0
          %828 = vmatpush1.msra.mxu0 %v799
          %829 = vmatprep.subr.mxu0 0.0
          %830 = vmatpush1.msra.mxu0 %v800
          %831 = vmatprep.subr.mxu0 0.0
          %832 = vmatpush1.msra.mxu0 %v801
          %833 = vmatprep.subr.mxu0 0.0
          %834 = vmatpush1.msra.mxu0 %v802
          %835 = vmatprep.subr.mxu0 0.0
          %836 = vmatpush1.msra.mxu0 %v803
          %837 = vmatprep.subr.mxu0 0.0
          %838 = vmatpush1.msra.mxu0 0.0
          %839 = vmatprep.subr.mxu0 0.0
          %840 = vmatpush1.msra.mxu0 0.0
          %841 = vmatprep.subr.mxu0 0.0
          %842 = vmatpush1.msra.mxu0 0.0
          %843 = vmatprep.subr.mxu0 0.0
          %844 = vmatpush1.msra.mxu0 0.0
          %845 = vmatprep.subr.mxu0 0.0
          %846 = vmatpush1.msra.mxu0 0.0
          %847 = vmatprep.subr.mxu0 0.0
          %848 = vmatpush1.msra.mxu0 0.0
          %849 = vmatprep.subr.mxu0 0.0
          %850 = vmatpush1.msra.mxu0 0.0
          %851 = vmatprep.subr.mxu0 0.0
          %852 = vmatpush1.msra.mxu0 0.0
          %853 = vmatprep.subr.mxu0 0.0
          %854 = vmatpush1.msra.mxu0 0.0
          %855 = vmatprep.subr.mxu0 0.0
          %856 = vmatpush1.msra.mxu0 0.0
          %857 = vmatprep.subr.mxu0 0.0
          %858 = vmatpush1.msra.mxu0 0.0
          %859 = vmatprep.subr.mxu0 0.0
          %860 = vmatpush1.msra.mxu0 0.0
          %861 = vmatprep.subr.mxu0 0.0
          %862 = vmatpush1.msra.mxu0 0.0
          %863 = vmatprep.subr.mxu0 0.0
          %864 = vmatpush1.msra.mxu0 0.0
          %865 = vmatprep.subr.mxu0 0.0
          %866 = vmatpush1.msra.mxu0 0.0
          %867 = vmatprep.subr.mxu0 0.0
          %868 = vmatpush1.msra.mxu0 0.0
          %869 = vmatprep.mubr.f32.mxu0 0.0
          %870 = vmatmul.mubr.f32.gmra.mrb[0].mxu0 %v787
          %v871 = vpop.f32.mrb[0].mxu0
          %v872 = vadd.f32 %v804, %v871
          %v873 = vpop.f32.mrb[0].mxu0
          %874 = vdwg.mxu0
          %875 = vst [vmem:[%s222] sm:$0x1] %v872
        $region70: #{tpu_custom_call.1} parent=35 // pred_fallthru
          _
        %s876 = sand.u32 %s130, 1
        %s877 = scalar_lea.sflag [#allocation9], %s876
        %s878 = sand.u32 %s130, 1
        %s879 = scalar_lea.vmem [#allocation12], %s878
        // Predicated region
        $region71: #{tpu_custom_call.1} parent=35 // pred_check
          %p880 = pneg %p140
        $region72: #{tpu_custom_call.1} parent=35 // pred_check_branch
          %882 = sbr.rel (%p880) target = $region74
        $region73: #{tpu_custom_call.1} parent=35 // pred_region
          %s884 = ssub.s32 16, 16
          %885 = vsyncadd %s877, %s884
          %s886 = smul.addr %s30, 16
          %s887 = scalar_lea.hbm %s6, %s886
          %s889 = sshll.u32 %s879, 4
          %s890 = int_to_ptr.vmem [resolvable:$true] %s889
          %892 = dma.vmem_to_hbm [thread:$0]  %s890, 16, %s887, %s877
        $region74: #{tpu_custom_call.1} parent=35 // pred_fallthru
          _
      $region36: #{tpu_custom_call.1} parent=5 // pred_fallthru
        _
      %p893 = scmp.le.s32.totalorder 2, %s21
      // Predicated region
      $region75: #{tpu_custom_call.1} parent=5 // pred_check
        %p894 = pneg %p893
      $region76: #{tpu_custom_call.1} parent=5 // pred_check_branch
        %896 = sbr.rel (%p894) target = $region78
      $region77: #{tpu_custom_call.1} parent=5 // pred_region
        %s897 = ssub.s32 %s21, 2
        // Predicated region
        $region79: #{tpu_custom_call.1} parent=77 // pred_check
          %p898 = pneg %p146
        $region80: #{tpu_custom_call.1} parent=77 // pred_check_branch
          %900 = sbr.rel (%p898) target = $region82
        $region81: #{tpu_custom_call.1} parent=77 // pred_region
          %s901 = sand.u32 %s131, 1
          %s902 = scalar_lea.sflag [#allocation9], %s901
          %s903 = sand.u32 %s131, 1
          %s904 = scalar_lea.vmem [#allocation12], %s903
          %905 = dma.done %s902, 16
        $region82: #{tpu_custom_call.1} parent=77 // pred_fallthru
          _
      $region78: #{tpu_custom_call.1} parent=5 // pred_fallthru
        _
    $region6: #{tpu_custom_call.1} parent=1 // loop_footer
      %s25 = sadd.s32 1, %s21
    $region7: #{tpu_custom_call.1} parent=1 // loop_footer_branch
      %20 = sbr.rel target = $region3
    $region8: #{tpu_custom_call.1} parent=1 // loop_exit
      _
    %906 = vsyncpa [#allocation8], 1
    %s907 = scalar_lea.sflag [#allocation8], 1
    %908 = vsyncpa %s907, 1
    %909 = vsyncpa [#allocation11], 1
    %910 = vsyncpa [#allocation9], 1
    %s911 = scalar_lea.sflag [#allocation9], 1
    %912 = vsyncpa %s911, 1
  %913 = vsyncmov [#allocation4]
  %s914 = vpop.sfrf %913
  %p915 = scmp.eq.s32.totalorder %s914, 0
  %p916 = pneg %p915
  %918 = shalt.err (%p916)

</llo_original>
